<compile_context>
chip_gen: v7x
topology: tpu7x:2x2x1
jax: 0.10.0
libtpu: 0.0.40
codegen_flags: <defaults>
</compile_context>

<pallas_src>
import jax
import jax.numpy as jnp
from jax.experimental import pallas as pl
from jax.experimental.pallas import tpu as pltpu


def _round_up(n, m):
    return ((n + m - 1) // m) * m


# ----------------------------------------------------------------------------
# Kernel: one (TB)-wide batch tile per grid step.
#   x_ref  : (4,   TB)  input features, batch on lanes
#   w1_ref : (128, 4)   fused layer-1 weight (transposed)
#   b1_ref : (128, 1)   fused layer-1 bias
#   w2_ref : (2,   128) folded dueling head weight (transposed)
#   b2_ref : (2,   1)   folded dueling head bias
#   q_ref  : (2,   TB)  Q-values, batch on lanes (lane-dense store)
# ----------------------------------------------------------------------------
def dueling_dqn_kernel(x_ref, w1_ref, b1_ref, w2_ref, b2_ref, q_ref):
    # Layer 1 (both streams fused): h = relu(W1^T @ x_t + b1)   -> (128, TB)
    h = jnp.dot(w1_ref[...], x_ref[...], preferred_element_type=jnp.float32)
    h = jnp.maximum(h + b1_ref[...], 0.0)

    # Folded dueling head: q_t = W2'^T @ h + b2'                -> (2, TB)
    q_ref[...] = (
        jnp.dot(w2_ref[...], h, preferred_element_type=jnp.float32)
        + b2_ref[...]
    )


# ----------------------------------------------------------------------------
# Wrapper
# ----------------------------------------------------------------------------
def dueling_dqn_forward(x, packed, *, tb=2048):
    """x: (B, 4) float32. packed: output of pack_params. Returns (B, 2)."""
    w1t, b1t, w2t, b2t = packed
    B = x.shape[0]

    # Batch tile: large to amortize per-step pipeline overhead, multiple of 128
    # so the lane axis is fully dense. Pad B up to a multiple of TB (padded
    # rows are zeros; their outputs are sliced off below).
    TB = max(128, min(int(tb), _round_up(B, 128)))
    Bp = _round_up(B, TB)

    xt = x.T                                   # (4, B) — layout plumbing only
    if Bp != B:
        xt = jnp.pad(xt, ((0, 0), (0, Bp - B)))

    grid = (Bp // TB,)
    const = lambda i: (0, 0)                   # weights: resident, DMA'd once

    qt = pl.pallas_call(
        dueling_dqn_kernel,
        out_shape=jax.ShapeDtypeStruct((2, Bp), jnp.float32),
        grid_spec=pltpu.PrefetchScalarGridSpec(
            num_scalar_prefetch=0,
            grid=grid,
            in_specs=[
                pl.BlockSpec((4, TB), lambda i: (0, i)),     # x tile
                pl.BlockSpec((128, 4), const),               # W1^T
                pl.BlockSpec((128, 1), const),               # b1
                pl.BlockSpec((2, 128), const),               # W2'^T
                pl.BlockSpec((2, 1), const),                 # b2'
            ],
            out_specs=pl.BlockSpec((2, TB), lambda i: (0, i)),
        ),
        compiler_params=pltpu.CompilerParams(
            # batch axis is embarrassingly parallel -> shards across the two
            # TensorCores on v7x; harmless no-op on v5e/v6e.
            dimension_semantics=("parallel",),
        ),
    )(xt, w1t, b1t, w2t, b2t)

    return qt[:, :B].T                         # back to (B, 2)


# ----------------------------------------------------------------------------
# Parameters
# ----------------------------------------------------------------------------
def init_params(key):
    """Deterministic init mimicking PyTorch nn.Linear default U(-1/sqrt(fan_in), +)."""
    def linear(key, fan_in, fan_out):
        kw, kb = jax.random.split(key)
        bound = 1.0 / jnp.sqrt(fan_in)
        # stored as (in, out) so reference computes x @ W + b
        w = jax.random.uniform(kw, (fan_in, fan_out), jnp.float32, -bound, bound)
        b = jax.random.uniform(kb, (1, fan_out), jnp.float32, -bound, bound)
        return w, b

    k1, k2, k3, k4 = jax.random.split(key, 4)
    w1a, b1a = linear(k1, 4, 64)    # fc1_adv
    w1v, b1v = linear(k2, 4, 64)    # fc1_val (see TODO(synk) above re: in_features)
    w2a, b2a = linear(k3, 64, 2)    # fc2_adv
    w2v, b2v = linear(k4, 64, 1)    # fc2_val
    return (w1a, b1a, w1v, b1v, w2a, b2a, w2v, b2v)


def pack_params(params):
    """Fuse/fold raw PyTorch-style params into the 4 kernel operands."""
    (w1a, b1a, w1v, b1v, w2a, b2a, w2v, b2v) = params

    # --- layer-1 fusion: one (4,128) matmul instead of two (4,64) matmuls ---
    w1 = jnp.concatenate([w1a, w1v], axis=1)          # (4, 128)
    b1 = jnp.concatenate([b1a, b1v], axis=1)          # (1, 128)

    # --- fold dueling combine (linear) into the head weight ----------------
    m = jnp.eye(2, dtype=jnp.float32) - 0.5           # I2 - 0.5*J2 (centering)
    ones_row = jnp.ones((1, 2), dtype=jnp.float32)
    w2 = jnp.concatenate([w2a @ m, w2v @ ones_row], axis=0)   # (128, 2)
    b2 = b2a @ m + b2v @ ones_row                             # (1, 2)

    # Transposed (batch-on-lane) layout for the kernel.
    return (w1.T, b1.T, w2.T, b2.T)   # (128,4), (128,1), (2,128), (2,1)


def reference_forward(x, params):
    """Pure-JAX reference matching the PyTorch forward (unfused)."""
    (w1a, b1a, w1v, b1v, w2a, b2a, w2v, b2v) = params
    adv_h = jax.nn.relu(x @ w1a + b1a)
    val_h = jax.nn.relu(x @ w1v + b1v)
    adv = adv_h @ w2a + b2a
    val = val_h @ w2v + b2v
    return val + adv - jnp.mean(adv, axis=1, keepdims=True)


if __name__ == "__main__":
    key = jax.random.PRNGKey(0)
    kx, kp = jax.random.split(key)

    params = init_params(kp)
    packed = pack_params(params)

    # Small shape implied by the module: x is (B, 4).
    B = 2
    x = jax.random.normal(kx, (B, 4), dtype=jnp.float32)
    q = jax.block_until_ready(dueling_dqn_forward(x, packed))
    q_ref = reference_forward(x, params)
    assert q.shape == (B, 2)
    assert jnp.allclose(q, q_ref, atol=1e-4, rtol=1e-4), (q, q_ref)

    # Exercise the batch grid (multiple tiles + ragged padding) with a small
    # forced tile size.
    B2 = 300
    x2 = jax.random.normal(jax.random.PRNGKey(1), (B2, 4), dtype=jnp.float32)
    q2 = jax.block_until_ready(dueling_dqn_forward(x2, packed, tb=128))
    q2_ref = reference_forward(x2, params)
    assert q2.shape == (B2, 2)
    assert jnp.allclose(q2, q2_ref, atol=1e-4, rtol=1e-4)

    print("KERNEL_OK")
</pallas_src>

<mosaic_0001>
module attributes {stable_mosaic.version = 11 : i64} {
  func.func @dueling_dqn_kernel(%arg0: i32, %arg1: memref<4x128xf32, #tpu.memory_space<vmem>>, %arg2: memref<128x4xf32, #tpu.memory_space<vmem>>, %arg3: memref<128x1xf32, #tpu.memory_space<vmem>>, %arg4: memref<2x128xf32, #tpu.memory_space<vmem>>, %arg5: memref<2x1xf32, #tpu.memory_space<vmem>>, %arg6: memref<2x128xf32, #tpu.memory_space<vmem>>) attributes {dimension_semantics = [#tpu.dimension_semantics<parallel>], iteration_bounds = array<i64: 1>, scalar_prefetch = 0 : i64, scratch_operands = 0 : i64, tpu.core_type = #tpu.core_type<tc>, window_params = [{transform_indices = @transform_0, window_bounds = array<i64: 4, 128>}, {pipeline_mode = #tpu.pipeline_mode<synchronous>, transform_indices = @transform_1, window_bounds = array<i64: 128, 4>}, {pipeline_mode = #tpu.pipeline_mode<synchronous>, transform_indices = @transform_2, window_bounds = array<i64: 128, 1>}, {pipeline_mode = #tpu.pipeline_mode<synchronous>, transform_indices = @transform_3, window_bounds = array<i64: 2, 128>}, {pipeline_mode = #tpu.pipeline_mode<synchronous>, transform_indices = @transform_4, window_bounds = array<i64: 2, 1>}, {transform_indices = @transform_5, window_bounds = array<i64: 2, 128>}]} {
    %c0 = arith.constant 0 : index
    %c0_0 = arith.constant 0 : index
    %0 = vector.load %arg2[%c0, %c0_0] : memref<128x4xf32, #tpu.memory_space<vmem>>, vector<128x4xf32>
    %c0_1 = arith.constant 0 : index
    %c0_2 = arith.constant 0 : index
    %1 = vector.load %arg1[%c0_1, %c0_2] : memref<4x128xf32, #tpu.memory_space<vmem>>, vector<4x128xf32>
    %cst = arith.constant dense<0.000000e+00> : vector<128x128xf32>
    %2 = tpu.matmul %0, %1, %cst {dimension_numbers = #tpu.dot_dimension_numbers<[1], [0], [0], [1], [0, 0, 1, 1], [], []>} : vector<128x4xf32>, vector<4x128xf32>, vector<128x128xf32> -> vector<128x128xf32>
    %c0_3 = arith.constant 0 : index
    %c0_4 = arith.constant 0 : index
    %3 = vector.load %arg3[%c0_3, %c0_4] : memref<128x1xf32, #tpu.memory_space<vmem>>, vector<128x1xf32>
    %4 = vector.broadcast %3 : vector<128x1xf32> to vector<128x128xf32>
    %5 = arith.addf %2, %4 : vector<128x128xf32>
    %cst_5 = arith.constant 0.000000e+00 : f32
    %6 = vector.broadcast %cst_5 : f32 to vector<128x128xf32>
    %7 = arith.maximumf %5, %6 : vector<128x128xf32>
    %c0_6 = arith.constant 0 : index
    %c0_7 = arith.constant 0 : index
    %8 = vector.load %arg4[%c0_6, %c0_7] : memref<2x128xf32, #tpu.memory_space<vmem>>, vector<2x128xf32>
    %cst_8 = arith.constant dense<0.000000e+00> : vector<2x128xf32>
    %9 = tpu.matmul %8, %7, %cst_8 {dimension_numbers = #tpu.dot_dimension_numbers<[1], [0], [0], [1], [0, 0, 1, 1], [], []>} : vector<2x128xf32>, vector<128x128xf32>, vector<2x128xf32> -> vector<2x128xf32>
    %c0_9 = arith.constant 0 : index
    %c0_10 = arith.constant 0 : index
    %10 = vector.load %arg5[%c0_9, %c0_10] : memref<2x1xf32, #tpu.memory_space<vmem>>, vector<2x1xf32>
    %11 = vector.broadcast %10 : vector<2x1xf32> to vector<2x128xf32>
    %12 = arith.addf %9, %11 : vector<2x128xf32>
    %c0_11 = arith.constant 0 : index
    %c0_12 = arith.constant 0 : index
    %13 = vector.load %arg6[%c0_11, %c0_12] : memref<2x128xf32, #tpu.memory_space<vmem>>, vector<2x128xf32>
    tpu.vector_store %arg6[%c0_11, %c0_12], %12 {strides = array<i32>} : memref<2x128xf32, #tpu.memory_space<vmem>>, vector<2x128xf32>,
    return
  }
  func.func @transform_0(%arg0: i32) -> (i32, i32) {
    %c0_i32 = arith.constant 0 : i32
    %c0_i32_0 = arith.constant 0 : i32
    return %c0_i32, %arg0 : i32, i32
  }
  func.func @transform_1(%arg0: i32) -> (i32, i32) {
    %c0_i32 = arith.constant 0 : i32
    %c0_i32_0 = arith.constant 0 : i32
    %c0_i32_1 = arith.constant 0 : i32
    return %c0_i32, %c0_i32_0 : i32, i32
  }
  func.func @transform_2(%arg0: i32) -> (i32, i32) {
    %c0_i32 = arith.constant 0 : i32
    %c0_i32_0 = arith.constant 0 : i32
    %c0_i32_1 = arith.constant 0 : i32
    return %c0_i32, %c0_i32_0 : i32, i32
  }
  func.func @transform_3(%arg0: i32) -> (i32, i32) {
    %c0_i32 = arith.constant 0 : i32
    %c0_i32_0 = arith.constant 0 : i32
    %c0_i32_1 = arith.constant 0 : i32
    return %c0_i32, %c0_i32_0 : i32, i32
  }
  func.func @transform_4(%arg0: i32) -> (i32, i32) {
    %c0_i32 = arith.constant 0 : i32
    %c0_i32_0 = arith.constant 0 : i32
    %c0_i32_1 = arith.constant 0 : i32
    return %c0_i32, %c0_i32_0 : i32, i32
  }
  func.func @transform_5(%arg0: i32) -> (i32, i32) {
    %c0_i32 = arith.constant 0 : i32
    %c0_i32_0 = arith.constant 0 : i32
    return %c0_i32, %arg0 : i32, i32
  }
}

</mosaic_0001>

<llo_original>
// kernel: tpu_custom_call.1
$region0: #{tpu_custom_call.1}
  #allocation0 [shape = 'u32[]', space=smem, size = 0x4, offset = 0x4, fixed_abs, tag = 'smem constant byte address 0x4 - core index']
  #allocation1 [shape = 'u32[144,128]{1,0:T(1,128)}', space=vmem, size = 0x12000, scoped, tag = 'internal scratch']
  %s0 = inlined_call_operand.vmem [shape: f32[4,128], index: 0, kind: input, shape index: {}]
  %s1 = inlined_call_operand.vmem [shape: f32[128,4], index: 1, kind: input, shape index: {}]
  %s2 = inlined_call_operand.vmem [shape: f32[128,1], index: 2, kind: input, shape index: {}]
  %s3 = inlined_call_operand.vmem [shape: f32[2,128], index: 3, kind: input, shape index: {}]
  %s4 = inlined_call_operand.vmem [shape: f32[2,1], index: 4, kind: input, shape index: {}]
  %s5 = inlined_call_operand.hbm [shape: f32[2,128], index: 5, kind: output, shape index: {}]
  %s6 = sld [smem:[#allocation0]]
  $region30: #{tpu_custom_call.1} parent=0
    _
  %s8 = ssub.s32 1, %s6
  %s9 = scalar_select 0, %s8, %s6
  $region1: #{tpu_custom_call.1} parent=0
    #allocation2 [shape = 'u8[1024]{0}', space=vmem, size = 0x400, scoped, tag = 'output window, operand 0, single buffered']
    #allocation3 [shape = 's32[1]{0}', space=sflag, size = 0x4, scoped, tag = 'scoped memory for tpu_custom_call.1']
    %10 = vsyncpa [#allocation3], 0
    // Predicated region
    $region2: #{tpu_custom_call.1} parent=1 // pred_check
      _
    $region3: #{tpu_custom_call.1} parent=1 // pred_check_branch
      %12 = sbr.rel (0) target = $region5
    $region4: #{tpu_custom_call.1} parent=1 // pred_region
      _
    $region5: #{tpu_custom_call.1} parent=1 // pred_fallthru
      _
    // Predicated region
    $region6: #{tpu_custom_call.1} parent=1 // pred_check
      _
    $region7: #{tpu_custom_call.1} parent=1 // pred_check_branch
      %14 = sbr.rel (0) target = $region9
    $region8: #{tpu_custom_call.1} parent=1 // pred_region
      _
    $region9: #{tpu_custom_call.1} parent=1 // pred_fallthru
      _
    // Predicated region
    $region10: #{tpu_custom_call.1} parent=1 // pred_check
      _
    $region11: #{tpu_custom_call.1} parent=1 // pred_check_branch
      %16 = sbr.rel (0) target = $region13
    $region12: #{tpu_custom_call.1} parent=1 // pred_region
      _
    $region13: #{tpu_custom_call.1} parent=1 // pred_fallthru
      _
    // Predicated region
    $region14: #{tpu_custom_call.1} parent=1 // pred_check
      _
    $region15: #{tpu_custom_call.1} parent=1 // pred_check_branch
      %18 = sbr.rel (0) target = $region17
    $region16: #{tpu_custom_call.1} parent=1 // pred_region
      _
    $region17: #{tpu_custom_call.1} parent=1 // pred_fallthru
      _
    // Predicated region
    $region18: #{tpu_custom_call.1} parent=1 // pred_check
      _
    $region19: #{tpu_custom_call.1} parent=1 // pred_check_branch
      %20 = sbr.rel (0) target = $region21
    $region20: #{tpu_custom_call.1} parent=1 // pred_region
      _
    $region21: #{tpu_custom_call.1} parent=1 // pred_fallthru
      _
    %v21 = vld [vmem:[%s1] sm:$0xff]
    %v22 = vld [vmem:[%s1 + $0x8] sm:$0xff]
    %v23 = vld [vmem:[%s1 + $0x10] sm:$0xff]
    %v24 = vld [vmem:[%s1 + $0x18] sm:$0xff]
    %v25 = vld [vmem:[%s1 + $0x20] sm:$0xff]
    %v26 = vld [vmem:[%s1 + $0x28] sm:$0xff]
    %v27 = vld [vmem:[%s1 + $0x30] sm:$0xff]
    %v28 = vld [vmem:[%s1 + $0x38] sm:$0xff]
    %v29 = vld [vmem:[%s1 + $0x40] sm:$0xff]
    %v30 = vld [vmem:[%s1 + $0x48] sm:$0xff]
    %v31 = vld [vmem:[%s1 + $0x50] sm:$0xff]
    %v32 = vld [vmem:[%s1 + $0x58] sm:$0xff]
    %v33 = vld [vmem:[%s1 + $0x60] sm:$0xff]
    %v34 = vld [vmem:[%s1 + $0x68] sm:$0xff]
    %v35 = vld [vmem:[%s1 + $0x70] sm:$0xff]
    %v36 = vld [vmem:[%s1 + $0x78] sm:$0xff]
    %v37 = vld [vmem:[%s0] sm:$0xf]
    %v38 = vld [vmem:[%s2] sm:$0xff]
    %v39 = vld [vmem:[%s2 + $0x8] sm:$0xff]
    %v40 = vld [vmem:[%s2 + $0x10] sm:$0xff]
    %v41 = vld [vmem:[%s2 + $0x18] sm:$0xff]
    %v42 = vld [vmem:[%s2 + $0x20] sm:$0xff]
    %v43 = vld [vmem:[%s2 + $0x28] sm:$0xff]
    %v44 = vld [vmem:[%s2 + $0x30] sm:$0xff]
    %v45 = vld [vmem:[%s2 + $0x38] sm:$0xff]
    %v46 = vld [vmem:[%s2 + $0x40] sm:$0xff]
    %v47 = vld [vmem:[%s2 + $0x48] sm:$0xff]
    %v48 = vld [vmem:[%s2 + $0x50] sm:$0xff]
    %v49 = vld [vmem:[%s2 + $0x58] sm:$0xff]
    %v50 = vld [vmem:[%s2 + $0x60] sm:$0xff]
    %v51 = vld [vmem:[%s2 + $0x68] sm:$0xff]
    %v52 = vld [vmem:[%s2 + $0x70] sm:$0xff]
    %v53 = vld [vmem:[%s2 + $0x78] sm:$0xff]
    %55 = vset.pattern.permute.xlu0 0
    %56 = vperm.xlu0 %55, %v38
    %v57 = vpop.permute.xlu0 %56
    %60 = vset.pattern.permute.xlu0 0
    %61 = vperm.xlu0 %60, %v39
    %v62 = vpop.permute.xlu0 %61
    %65 = vset.pattern.permute.xlu0 0
    %66 = vperm.xlu0 %65, %v40
    %v67 = vpop.permute.xlu0 %66
    %70 = vset.pattern.permute.xlu0 0
    %71 = vperm.xlu0 %70, %v41
    %v72 = vpop.permute.xlu0 %71
    %75 = vset.pattern.permute.xlu0 0
    %76 = vperm.xlu0 %75, %v42
    %v77 = vpop.permute.xlu0 %76
    %80 = vset.pattern.permute.xlu0 0
    %81 = vperm.xlu0 %80, %v43
    %v82 = vpop.permute.xlu0 %81
    %85 = vset.pattern.permute.xlu0 0
    %86 = vperm.xlu0 %85, %v44
    %v87 = vpop.permute.xlu0 %86
    %90 = vset.pattern.permute.xlu0 0
    %91 = vperm.xlu0 %90, %v45
    %v92 = vpop.permute.xlu0 %91
    %95 = vset.pattern.permute.xlu0 0
    %96 = vperm.xlu0 %95, %v46
    %v97 = vpop.permute.xlu0 %96
    %100 = vset.pattern.permute.xlu0 0
    %101 = vperm.xlu0 %100, %v47
    %v102 = vpop.permute.xlu0 %101
    %105 = vset.pattern.permute.xlu0 0
    %106 = vperm.xlu0 %105, %v48
    %v107 = vpop.permute.xlu0 %106
    %110 = vset.pattern.permute.xlu0 0
    %111 = vperm.xlu0 %110, %v49
    %v112 = vpop.permute.xlu0 %111
    %115 = vset.pattern.permute.xlu0 0
    %116 = vperm.xlu0 %115, %v50
    %v117 = vpop.permute.xlu0 %116
    %120 = vset.pattern.permute.xlu0 0
    %121 = vperm.xlu0 %120, %v51
    %v122 = vpop.permute.xlu0 %121
    %125 = vset.pattern.permute.xlu0 0
    %126 = vperm.xlu0 %125, %v52
    %v127 = vpop.permute.xlu0 %126
    %130 = vset.pattern.permute.xlu0 0
    %131 = vperm.xlu0 %130, %v53
    %v132 = vpop.permute.xlu0 %131
    %vm134 = vcmask 31744
    %v136 = vsel %vm134, %v21, 0
    %v139 = vsel %vm134, %v22, 0
    %v142 = vsel %vm134, %v23, 0
    %v145 = vsel %vm134, %v24, 0
    %v148 = vsel %vm134, %v25, 0
    %v151 = vsel %vm134, %v26, 0
    %v154 = vsel %vm134, %v27, 0
    %v157 = vsel %vm134, %v28, 0
    %v160 = vsel %vm134, %v29, 0
    %v163 = vsel %vm134, %v30, 0
    %v166 = vsel %vm134, %v31, 0
    %v169 = vsel %vm134, %v32, 0
    %v172 = vsel %vm134, %v33, 0
    %v175 = vsel %vm134, %v34, 0
    %v178 = vsel %vm134, %v35, 0
    %v181 = vsel %vm134, %v36, 0
    %vm183 = vcmask 1043456
    %v185 = vsel %vm183, %v37, 0
    %187 = vmatprep.subr.mxu0 0.0
    %188 = vmatpush1.msra.mxu0 %v185
    %189 = vmatprep.subr.mxu0 0.0
    %190 = vmatpush1.msra.mxu0 0.0
    %191 = vmatprep.subr.mxu0 0.0
    %192 = vmatpush1.msra.mxu0 0.0
    %193 = vmatprep.subr.mxu0 0.0
    %194 = vmatpush1.msra.mxu0 0.0
    %195 = vmatprep.subr.mxu0 0.0
    %196 = vmatpush1.msra.mxu0 0.0
    %197 = vmatprep.subr.mxu0 0.0
    %198 = vmatpush1.msra.mxu0 0.0
    %199 = vmatprep.subr.mxu0 0.0
    %200 = vmatpush1.msra.mxu0 0.0
    %201 = vmatprep.subr.mxu0 0.0
    %202 = vmatpush1.msra.mxu0 0.0
    %203 = vmatprep.subr.mxu0 0.0
    %204 = vmatpush1.msra.mxu0 0.0
    %205 = vmatprep.subr.mxu0 0.0
    %206 = vmatpush1.msra.mxu0 0.0
    %207 = vmatprep.subr.mxu0 0.0
    %208 = vmatpush1.msra.mxu0 0.0
    %209 = vmatprep.subr.mxu0 0.0
    %210 = vmatpush1.msra.mxu0 0.0
    %211 = vmatprep.subr.mxu0 0.0
    %212 = vmatpush1.msra.mxu0 0.0
    %213 = vmatprep.subr.mxu0 0.0
    %214 = vmatpush1.msra.mxu0 0.0
    %215 = vmatprep.subr.mxu0 0.0
    %216 = vmatpush1.msra.mxu0 0.0
    %217 = vmatprep.subr.mxu0 0.0
    %218 = vmatpush1.msra.mxu0 0.0
    %219 = vmatprep.subr.mxu0 0.0
    %220 = vmatpush1.msra.mxu0 0.0
    %221 = vmatprep.subr.mxu0 0.0
    %222 = vmatpush1.msra.mxu0 0.0
    %223 = vmatprep.subr.mxu0 0.0
    %224 = vmatpush1.msra.mxu0 0.0
    %225 = vmatprep.subr.mxu0 0.0
    %226 = vmatpush1.msra.mxu0 0.0
    %227 = vmatprep.subr.mxu0 0.0
    %228 = vmatpush1.msra.mxu0 0.0
    %229 = vmatprep.subr.mxu0 0.0
    %230 = vmatpush1.msra.mxu0 0.0
    %231 = vmatprep.subr.mxu0 0.0
    %232 = vmatpush1.msra.mxu0 0.0
    %233 = vmatprep.subr.mxu0 0.0
    %234 = vmatpush1.msra.mxu0 0.0
    %235 = vmatprep.subr.mxu0 0.0
    %236 = vmatpush1.msra.mxu0 0.0
    %237 = vmatprep.subr.mxu0 0.0
    %238 = vmatpush1.msra.mxu0 0.0
    %239 = vmatprep.subr.mxu0 0.0
    %240 = vmatpush1.msra.mxu0 0.0
    %241 = vmatprep.subr.mxu0 0.0
    %242 = vmatpush1.msra.mxu0 0.0
    %243 = vmatprep.subr.mxu0 0.0
    %244 = vmatpush1.msra.mxu0 0.0
    %245 = vmatprep.subr.mxu0 0.0
    %246 = vmatpush1.msra.mxu0 0.0
    %247 = vmatprep.subr.mxu0 0.0
    %248 = vmatpush1.msra.mxu0 0.0
    %249 = vmatprep.subr.mxu0 0.0
    %250 = vmatpush1.msra.mxu0 0.0
    %251 = vmatprep.mubr.f32.mxu0 0.0
    %252 = vmatmul.mubr.f32.gmra.mrb[0].mxu0 %v136
    %v253 = vpop.f32.mrb[0].mxu0
    %v254 = vadd.f32 %v57, %v253
    %v255 = vpop.f32.mrb[0].mxu0
    %256 = vmatprep.mubr.f32.mxu0 0.0
    %257 = vmatmul.mubr.f32.gmra.mrb[0].mxu0 %v139
    %v258 = vpop.f32.mrb[0].mxu0
    %v259 = vadd.f32 %v62, %v258
    %v260 = vpop.f32.mrb[0].mxu0
    %261 = vmatprep.mubr.f32.mxu0 0.0
    %262 = vmatmul.mubr.f32.gmra.mrb[0].mxu0 %v142
    %v263 = vpop.f32.mrb[0].mxu0
    %v264 = vadd.f32 %v67, %v263
    %v265 = vpop.f32.mrb[0].mxu0
    %266 = vmatprep.mubr.f32.mxu0 0.0
    %267 = vmatmul.mubr.f32.gmra.mrb[0].mxu0 %v145
    %v268 = vpop.f32.mrb[0].mxu0
    %v269 = vadd.f32 %v72, %v268
    %v270 = vpop.f32.mrb[0].mxu0
    %271 = vmatprep.mubr.f32.mxu0 0.0
    %272 = vmatmul.mubr.f32.gmra.mrb[0].mxu0 %v148
    %v273 = vpop.f32.mrb[0].mxu0
    %v274 = vadd.f32 %v77, %v273
    %v275 = vpop.f32.mrb[0].mxu0
    %276 = vmatprep.mubr.f32.mxu0 0.0
    %277 = vmatmul.mubr.f32.gmra.mrb[0].mxu0 %v151
    %v278 = vpop.f32.mrb[0].mxu0
    %v279 = vadd.f32 %v82, %v278
    %v280 = vpop.f32.mrb[0].mxu0
    %281 = vmatprep.mubr.f32.mxu0 0.0
    %282 = vmatmul.mubr.f32.gmra.mrb[0].mxu0 %v154
    %v283 = vpop.f32.mrb[0].mxu0
    %v284 = vadd.f32 %v87, %v283
    %v285 = vpop.f32.mrb[0].mxu0
    %286 = vmatprep.mubr.f32.mxu0 0.0
    %287 = vmatmul.mubr.f32.gmra.mrb[0].mxu0 %v157
    %v288 = vpop.f32.mrb[0].mxu0
    %v289 = vadd.f32 %v92, %v288
    %v290 = vpop.f32.mrb[0].mxu0
    %291 = vmatprep.mubr.f32.mxu0 0.0
    %292 = vmatmul.mubr.f32.gmra.mrb[0].mxu0 %v160
    %v293 = vpop.f32.mrb[0].mxu0
    %v294 = vadd.f32 %v97, %v293
    %v295 = vpop.f32.mrb[0].mxu0
    %296 = vmatprep.mubr.f32.mxu0 0.0
    %297 = vmatmul.mubr.f32.gmra.mrb[0].mxu0 %v163
    %v298 = vpop.f32.mrb[0].mxu0
    %v299 = vadd.f32 %v102, %v298
    %v300 = vpop.f32.mrb[0].mxu0
    %301 = vmatprep.mubr.f32.mxu0 0.0
    %302 = vmatmul.mubr.f32.gmra.mrb[0].mxu0 %v166
    %v303 = vpop.f32.mrb[0].mxu0
    %v304 = vadd.f32 %v107, %v303
    %v305 = vpop.f32.mrb[0].mxu0
    %306 = vmatprep.mubr.f32.mxu0 0.0
    %307 = vmatmul.mubr.f32.gmra.mrb[0].mxu0 %v169
    %v308 = vpop.f32.mrb[0].mxu0
    %v309 = vadd.f32 %v112, %v308
    %v310 = vpop.f32.mrb[0].mxu0
    %311 = vmatprep.mubr.f32.mxu0 0.0
    %312 = vmatmul.mubr.f32.gmra.mrb[0].mxu0 %v172
    %v313 = vpop.f32.mrb[0].mxu0
    %v314 = vadd.f32 %v117, %v313
    %v315 = vpop.f32.mrb[0].mxu0
    %316 = vmatprep.mubr.f32.mxu0 0.0
    %317 = vmatmul.mubr.f32.gmra.mrb[0].mxu0 %v175
    %v318 = vpop.f32.mrb[0].mxu0
    %v319 = vadd.f32 %v122, %v318
    %v320 = vpop.f32.mrb[0].mxu0
    %321 = vmatprep.mubr.f32.mxu0 0.0
    %322 = vmatmul.mubr.f32.gmra.mrb[0].mxu0 %v178
    %v323 = vpop.f32.mrb[0].mxu0
    %v324 = vadd.f32 %v127, %v323
    %v325 = vpop.f32.mrb[0].mxu0
    %326 = vmatprep.mubr.f32.mxu0 0.0
    %327 = vmatmul.mubr.f32.gmra.mrb[0].mxu0 %v181
    %v328 = vpop.f32.mrb[0].mxu0
    %v329 = vadd.f32 %v132, %v328
    %v330 = vpop.f32.mrb[0].mxu0
    %331 = vdwg.mxu0
    %v332 = vmax.f32 %v254, 0.0
    %v333 = vmax.f32 %v259, 0.0
    %v334 = vmax.f32 %v264, 0.0
    %v335 = vmax.f32 %v269, 0.0
    %v336 = vmax.f32 %v274, 0.0
    %v337 = vmax.f32 %v279, 0.0
    %v338 = vmax.f32 %v284, 0.0
    %v339 = vmax.f32 %v289, 0.0
    %v340 = vmax.f32 %v294, 0.0
    %v341 = vmax.f32 %v299, 0.0
    %v342 = vmax.f32 %v304, 0.0
    %v343 = vmax.f32 %v309, 0.0
    %v344 = vmax.f32 %v314, 0.0
    %v345 = vmax.f32 %v319, 0.0
    %v346 = vmax.f32 %v324, 0.0
    %v347 = vmax.f32 %v329, 0.0
    %v348 = vld [vmem:[%s3] sm:$0x3]
    %v349 = vld [vmem:[%s4] sm:$0x3]
    %351 = vset.pattern.permute.xlu0 0
    %352 = vperm.xlu0 %351, %v349
    %v353 = vpop.permute.xlu0 %352
    %355 = vmatprep.subr.mxu0 0.0
    %356 = vmatpush1.msra.mxu0 %v332
    %357 = vmatprep.subr.mxu0 0.0
    %358 = vmatpush1.msra.mxu0 %v333
    %359 = vmatprep.subr.mxu0 0.0
    %360 = vmatpush1.msra.mxu0 %v334
    %361 = vmatprep.subr.mxu0 0.0
    %362 = vmatpush1.msra.mxu0 %v335
    %363 = vmatprep.subr.mxu0 0.0
    %364 = vmatpush1.msra.mxu0 %v336
    %365 = vmatprep.subr.mxu0 0.0
    %366 = vmatpush1.msra.mxu0 %v337
    %367 = vmatprep.subr.mxu0 0.0
    %368 = vmatpush1.msra.mxu0 %v338
    %369 = vmatprep.subr.mxu0 0.0
    %370 = vmatpush1.msra.mxu0 %v339
    %371 = vmatprep.subr.mxu0 0.0
    %372 = vmatpush1.msra.mxu0 %v340
    %373 = vmatprep.subr.mxu0 0.0
    %374 = vmatpush1.msra.mxu0 %v341
    %375 = vmatprep.subr.mxu0 0.0
    %376 = vmatpush1.msra.mxu0 %v342
    %377 = vmatprep.subr.mxu0 0.0
    %378 = vmatpush1.msra.mxu0 %v343
    %379 = vmatprep.subr.mxu0 0.0
    %380 = vmatpush1.msra.mxu0 %v344
    %381 = vmatprep.subr.mxu0 0.0
    %382 = vmatpush1.msra.mxu0 %v345
    %383 = vmatprep.subr.mxu0 0.0
    %384 = vmatpush1.msra.mxu0 %v346
    %385 = vmatprep.subr.mxu0 0.0
    %386 = vmatpush1.msra.mxu0 %v347
    %387 = vmatprep.subr.mxu0 0.0
    %388 = vmatpush1.msra.mxu0 0.0
    %389 = vmatprep.subr.mxu0 0.0
    %390 = vmatpush1.msra.mxu0 0.0
    %391 = vmatprep.subr.mxu0 0.0
    %392 = vmatpush1.msra.mxu0 0.0
    %393 = vmatprep.subr.mxu0 0.0
    %394 = vmatpush1.msra.mxu0 0.0
    %395 = vmatprep.subr.mxu0 0.0
    %396 = vmatpush1.msra.mxu0 0.0
    %397 = vmatprep.subr.mxu0 0.0
    %398 = vmatpush1.msra.mxu0 0.0
    %399 = vmatprep.subr.mxu0 0.0
    %400 = vmatpush1.msra.mxu0 0.0
    %401 = vmatprep.subr.mxu0 0.0
    %402 = vmatpush1.msra.mxu0 0.0
    %403 = vmatprep.subr.mxu0 0.0
    %404 = vmatpush1.msra.mxu0 0.0
    %405 = vmatprep.subr.mxu0 0.0
    %406 = vmatpush1.msra.mxu0 0.0
    %407 = vmatprep.subr.mxu0 0.0
    %408 = vmatpush1.msra.mxu0 0.0
    %409 = vmatprep.subr.mxu0 0.0
    %410 = vmatpush1.msra.mxu0 0.0
    %411 = vmatprep.subr.mxu0 0.0
    %412 = vmatpush1.msra.mxu0 0.0
    %413 = vmatprep.subr.mxu0 0.0
    %414 = vmatpush1.msra.mxu0 0.0
    %415 = vmatprep.subr.mxu0 0.0
    %416 = vmatpush1.msra.mxu0 0.0
    %417 = vmatprep.subr.mxu0 0.0
    %418 = vmatpush1.msra.mxu0 0.0
    %419 = vmatprep.mubr.f32.mxu0 0.0
    %420 = vmatmul.mubr.f32.gmra.mrb[0].mxu0 %v348
    %v421 = vpop.f32.mrb[0].mxu0
    %v422 = vadd.f32 %v353, %v421
    %v423 = vpop.f32.mrb[0].mxu0
    %424 = vdwg.mxu0
    %425 = vst [vmem:[#allocation2] sm:$0x3] %v422
    // Predicated region
    $region22: #{tpu_custom_call.1} parent=1 // pred_check
      _
    $region23: #{tpu_custom_call.1} parent=1 // pred_check_branch
      %427 = sbr.rel (0) target = $region25
    $region24: #{tpu_custom_call.1} parent=1 // pred_region
      %s429 = ssub.s32 32, 32
      %430 = vsyncadd [#allocation3], %s429
      %s432 = sshll.u32 [#allocation2], 4
      %s433 = int_to_ptr.vmem [resolvable:$true] %s432
      %435 = dma.vmem_to_hbm [thread:$0]  %s433, 32, %s5, [#allocation3]
    $region25: #{tpu_custom_call.1} parent=1 // pred_fallthru
      _
    // Predicated region
    $region26: #{tpu_custom_call.1} parent=1 // pred_check
      _
    $region27: #{tpu_custom_call.1} parent=1 // pred_check_branch
      %437 = sbr.rel (0) target = $region29
    $region28: #{tpu_custom_call.1} parent=1 // pred_region
      %438 = dma.done [#allocation3], 32
    $region29: #{tpu_custom_call.1} parent=1 // pred_fallthru
      _
    %439 = vsyncpa [#allocation3], 1

</llo_original>
